<compile_context>
chip_gen: v7x
topology: tpu7x:2x2x1
jax: 0.10.0
libtpu: 0.0.40
codegen_flags: <defaults>
</compile_context>

<pallas_src>
import math

import jax
import jax.numpy as jnp
from jax import lax
from jax.experimental import pallas as pl
from jax.experimental.pallas import tpu as pltpu

EPS = 1e-5                       # nn.BatchNorm2d default eps
_VMEM_LIMIT = 48 * 1024 * 1024   # <= physical VMEM on v5e/v6e/v7x
_DEFAULT_BLOCK_BYTES = 4 * 1024 * 1024


# ---------------------------------------------------------------------------
# Kernels
# ---------------------------------------------------------------------------
def _cbn_fused_kernel(x_ref, gb_ref, o_ref):
    """Single-sweep path: the block carries full N and H*W, so per-channel
    batch stats are complete inside the block.  Fused sum/sumsq + FMA norm."""
    x = x_ref[...].astype(jnp.float32)                       # (N, TC, HW)
    inv_n = 1.0 / (x.shape[0] * x.shape[2])

    s = jnp.sum(jnp.sum(x, axis=2, keepdims=True), axis=0, keepdims=True)       # (1,TC,1)
    sq = jnp.sum(jnp.sum(x * x, axis=2, keepdims=True), axis=0, keepdims=True)  # (1,TC,1)
    mean = s * inv_n
    var = jnp.maximum(sq * inv_n - mean * mean, 0.0)
    inv_std = lax.rsqrt(var + EPS)                           # EUP rsqrt

    gb = gb_ref[...].astype(jnp.float32)                     # (N, 2, TC, 1)
    gamma = gb[:, 0]                                         # (N, TC, 1)
    beta = gb[:, 1]
    a = gamma * inv_std                                      # (N, TC, 1)
    b = beta - a * mean
    o_ref[...] = (a * x + b).astype(o_ref.dtype)


def _cbn_stats_kernel(x_ref, sum_ref, sq_ref):
    """Pass 1 of the HW-split path: per-channel sum / sum-of-squares, with the
    output block revisited (accumulator) across the HW reduction axis."""
    h = pl.program_id(1)

    @pl.when(h == 0)
    def _():
        sum_ref[...] = jnp.zeros_like(sum_ref)
        sq_ref[...] = jnp.zeros_like(sq_ref)

    x = x_ref[...].astype(jnp.float32)                       # (N, TC, THW)
    sum_ref[...] += jnp.sum(jnp.sum(x, axis=2, keepdims=True), axis=0)      # (TC,1)
    sq_ref[...] += jnp.sum(jnp.sum(x * x, axis=2, keepdims=True), axis=0)   # (TC,1)


def _cbn_apply_kernel(x_ref, ab_ref, o_ref):
    """Pass 2 of the HW-split path: pure HBM-streaming o = a*x + b."""
    x = x_ref[...].astype(jnp.float32)                       # (N, TC, THW)
    ab = ab_ref[...].astype(jnp.float32)                     # (N, 2, TC, 1)
    o_ref[...] = (ab[:, 0] * x + ab[:, 1]).astype(o_ref.dtype)


# ---------------------------------------------------------------------------
# Tiling heuristics
# ---------------------------------------------------------------------------
def _pick_channel_tile(cp, n, hw, itemsize, tile_mult, target_bytes):
    """Largest channel tile TC that is a multiple of tile_mult, divides cp, and
    keeps an (n, TC, hw) block near target_bytes.  Prefers TCs that leave >= 2
    grid steps so both v7x TensorCores get work."""
    max_tc = max(tile_mult, target_bytes // max(1, n * hw * itemsize))
    fitting = [tc for tc in range(tile_mult, cp + 1, tile_mult)
               if cp % tc == 0 and tc <= max_tc]
    if not fitting:
        return tile_mult
    balanced = [tc for tc in fitting if cp // tc >= 2]
    return max(balanced) if balanced else max(fitting)


def _pick_hw_tile(hw, n, itemsize, tile_mult, target_bytes):
    """Largest multiple-of-128 divisor of hw keeping an (n, tile_mult, THW)
    block near target_bytes."""
    best = 128
    for thw in range(128, hw + 1, 128):
        if hw % thw == 0 and n * tile_mult * thw * itemsize <= target_bytes:
            best = thw
    return best


def _compiler_params(semantics):
    return pltpu.CompilerParams(dimension_semantics=semantics,
                                vmem_limit_bytes=_VMEM_LIMIT)


# ---------------------------------------------------------------------------
# Wrapper
# ---------------------------------------------------------------------------
def conditional_batch_norm(x, style, w_orig, bias, *,
                           target_block_bytes=_DEFAULT_BLOCK_BYTES):
    """x: (N, C, H, W); style: (N, 512); w_orig: (2C, 512); bias: (2C,)."""
    N, C, H, W = x.shape
    HW = H * W
    in_dim = w_orig.shape[1]
    scale = math.sqrt(2.0 / in_dim)  # EqualLR: fan_in = in_dim * 1

    # EqualLinear hoisted to XLA; fold the EqualLR scale into the tiny style
    # activations instead of materializing a scaled (2C, 512) weight copy.
    s = (style.astype(jnp.float32) * scale) @ w_orig.astype(jnp.float32).T \
        + bias.astype(jnp.float32)                           # (N, 2C)
    gamma = s[:, :C]                                         # (N, C)
    beta = s[:, C:]                                          # (N, C)

    itemsize = jnp.dtype(x.dtype).itemsize
    tile_mult = 16 if itemsize == 2 else 8                   # sublane tile

    # Pad channels up to a multiple of the sublane tile so the channel grid
    # always tiles cleanly.  Padded channels carry zeros and are sliced off.
    Cp = ((C + tile_mult - 1) // tile_mult) * tile_mult
    pad_c = Cp - C

    x_flat = x.reshape(N, C, HW)                             # free reshape
    if pad_c:
        x_flat = jnp.pad(x_flat, ((0, 0), (0, pad_c), (0, 0)))
        gamma = jnp.pad(gamma, ((0, 0), (0, pad_c)))
        beta = jnp.pad(beta, ((0, 0), (0, pad_c)))

    # TODO(synk): for tiny feature maps (H*W < 128) the lane axis is not
    # 128-dense; a (C, N*HW)-style relayout would avoid masked stores there.

    min_fused_block = N * tile_mult * HW * itemsize
    use_two_pass = (min_fused_block > target_block_bytes
                    and HW % 128 == 0 and HW > 128)

    if not use_two_pass:
        # --- single-sweep fused path -------------------------------------
        TC = _pick_channel_tile(Cp, N, HW, itemsize, tile_mult, target_block_bytes)
        gb = jnp.stack([gamma, beta], axis=1)[:, :, :, None]  # (N, 2, Cp, 1)
        out_flat = pl.pallas_call(
            _cbn_fused_kernel,
            out_shape=jax.ShapeDtypeStruct((N, Cp, HW), x.dtype),
            grid=(Cp // TC,),
            in_specs=[
                pl.BlockSpec((N, TC, HW), lambda c: (0, c, 0)),
                pl.BlockSpec((N, 2, TC, 1), lambda c: (0, 0, c, 0)),
            ],
            out_specs=pl.BlockSpec((N, TC, HW), lambda c: (0, c, 0)),
            compiler_params=_compiler_params(("parallel",)),
        )(x_flat, gb)
    else:
        # --- HW-split two-pass path ---------------------------------------
        THW = _pick_hw_tile(HW, N, itemsize, tile_mult, target_block_bytes)
        TC = _pick_channel_tile(Cp, N, THW, itemsize, tile_mult, target_block_bytes)
        grid = (Cp // TC, HW // THW)

        sums, sqs = pl.pallas_call(
            _cbn_stats_kernel,
            out_shape=(jax.ShapeDtypeStruct((Cp, 1), jnp.float32),
                       jax.ShapeDtypeStruct((Cp, 1), jnp.float32)),
            grid=grid,
            in_specs=[pl.BlockSpec((N, TC, THW), lambda c, h: (0, c, h))],
            out_specs=(pl.BlockSpec((TC, 1), lambda c, h: (c, 0)),
                       pl.BlockSpec((TC, 1), lambda c, h: (c, 0))),
            compiler_params=_compiler_params(("parallel", "arbitrary")),
        )(x_flat)

        inv_n = 1.0 / (N * HW)
        mean = sums[:, 0] * inv_n                            # (Cp,)
        var = jnp.maximum(sqs[:, 0] * inv_n - mean * mean, 0.0)
        inv_std = lax.rsqrt(var + EPS)
        a = gamma * inv_std[None, :]                         # (N, Cp)
        b = beta - a * mean[None, :]
        ab = jnp.stack([a, b], axis=1)[:, :, :, None]        # (N, 2, Cp, 1)

        out_flat = pl.pallas_call(
            _cbn_apply_kernel,
            out_shape=jax.ShapeDtypeStruct((N, Cp, HW), x.dtype),
            grid=grid,
            in_specs=[
                pl.BlockSpec((N, TC, THW), lambda c, h: (0, c, h)),
                pl.BlockSpec((N, 2, TC, 1), lambda c, h: (0, 0, c, 0)),
            ],
            out_specs=pl.BlockSpec((N, TC, THW), lambda c, h: (0, c, h)),
            compiler_params=_compiler_params(("parallel", "parallel")),
        )(x_flat, ab)

    out = out_flat[:, :C, :] if pad_c else out_flat
    return out.reshape(N, C, H, W)


# ---------------------------------------------------------------------------
# Pure-JAX reference of the PyTorch forward (training-mode BN).
# TODO(synk): running_mean/running_var side-effect updates of nn.BatchNorm2d
# are not computed (forward activation only).
# ---------------------------------------------------------------------------
def _reference(x, style, w_orig, bias):
    C = x.shape[1]
    scale = math.sqrt(2.0 / w_orig.shape[1])
    s = style @ (w_orig * scale).T + bias                    # (N, 2C)
    gamma = s[:, :C][:, :, None, None]
    beta = s[:, C:][:, :, None, None]
    mean = x.mean(axis=(0, 2, 3), keepdims=True)
    var = ((x - mean) ** 2).mean(axis=(0, 2, 3), keepdims=True)
    return gamma * (x - mean) / jnp.sqrt(var + EPS) + beta


if __name__ == "__main__":
    N, C, H, W, STYLE_DIM = 2, 4, 16, 16, 512

    key = jax.random.PRNGKey(0)
    kx, ks, kw = jax.random.split(key, 3)
    x = jax.random.normal(kx, (N, C, H, W), dtype=jnp.float32)
    style = jax.random.normal(ks, (N, STYLE_DIM), dtype=jnp.float32)

    # EqualLinear(512, 2C): weight_orig ~ N(0,1); bias[:C]=1, bias[C:]=0.
    w_orig = jax.random.normal(kw, (2 * C, STYLE_DIM), dtype=jnp.float32)
    bias = jnp.concatenate([jnp.ones((C,), jnp.float32),
                            jnp.zeros((C,), jnp.float32)])

    out = conditional_batch_norm(x, style, w_orig, bias)
    jax.block_until_ready(out)
    ref = _reference(x, style, w_orig, bias)
    assert out.shape == (N, C, H, W)
    assert jnp.allclose(out, ref, atol=1e-4, rtol=1e-4), "fused path mismatch"

    # Also exercise the HW-split two-pass path (forced via a tiny block budget).
    N2, C2, H2, W2 = 2, 8, 32, 32
    x2 = jax.random.normal(kx, (N2, C2, H2, W2), dtype=jnp.float32)
    style2 = jax.random.normal(ks, (N2, STYLE_DIM), dtype=jnp.float32)
    w2 = jax.random.normal(kw, (2 * C2, STYLE_DIM), dtype=jnp.float32)
    b2 = jnp.concatenate([jnp.ones((C2,), jnp.float32),
                          jnp.zeros((C2,), jnp.float32)])
    out2 = conditional_batch_norm(x2, style2, w2, b2,
                                  target_block_bytes=32 * 1024)
    jax.block_until_ready(out2)
    ref2 = _reference(x2, style2, w2, b2)
    assert jnp.allclose(out2, ref2, atol=1e-4, rtol=1e-4), "two-pass path mismatch"

    print("KERNEL_OK")
</pallas_src>

<mosaic_0001>
module attributes {stable_mosaic.version = 11 : i64} {
  func.func @_cbn_fused_kernel(%arg0: i32, %arg1: memref<2x8x256xf32, #tpu.memory_space<vmem>>, %arg2: memref<2x2x8x1xf32, #tpu.memory_space<vmem>>, %arg3: memref<2x8x256xf32, #tpu.memory_space<vmem>>) attributes {dimension_semantics = [#tpu.dimension_semantics<parallel>], iteration_bounds = array<i64: 1>, scalar_prefetch = 0 : i64, scratch_operands = 0 : i64, tpu.core_type = #tpu.core_type<tc>, window_params = [{transform_indices = @transform_0, window_bounds = array<i64: 2, 8, 256>}, {transform_indices = @transform_1, window_bounds = array<i64: 2, 2, 8, 1>}, {transform_indices = @transform_2, window_bounds = array<i64: 2, 8, 256>}]} {
    %c0 = arith.constant 0 : index
    %c0_0 = arith.constant 0 : index
    %c0_1 = arith.constant 0 : index
    %0 = vector.load %arg1[%c0, %c0_0, %c0_1] : memref<2x8x256xf32, #tpu.memory_space<vmem>>, vector<2x8x256xf32>
    %cst = arith.constant dense<0.000000e+00> : vector<2x8xf32>
    %1 = vector.multi_reduction <add>, %0, %cst [2] : vector<2x8x256xf32> to vector<2x8xf32>
    %2 = vector.shape_cast %1 : vector<2x8xf32> to vector<2x8x1xf32>
    %cst_2 = arith.constant dense<0.000000e+00> : vector<8x1xf32>
    %3 = vector.multi_reduction <add>, %2, %cst_2 [0] : vector<2x8x1xf32> to vector<8x1xf32>
    %4 = vector.shape_cast %3 : vector<8x1xf32> to vector<1x8x1xf32>
    %5 = arith.mulf %0, %0 : vector<2x8x256xf32>
    %cst_3 = arith.constant dense<0.000000e+00> : vector<2x8xf32>
    %6 = vector.multi_reduction <add>, %5, %cst_3 [2] : vector<2x8x256xf32> to vector<2x8xf32>
    %7 = vector.shape_cast %6 : vector<2x8xf32> to vector<2x8x1xf32>
    %cst_4 = arith.constant dense<0.000000e+00> : vector<8x1xf32>
    %8 = vector.multi_reduction <add>, %7, %cst_4 [0] : vector<2x8x1xf32> to vector<8x1xf32>
    %9 = vector.shape_cast %8 : vector<8x1xf32> to vector<1x8x1xf32>
    %cst_5 = arith.constant 0.001953125 : f32
    %10 = vector.broadcast %cst_5 : f32 to vector<1x8x1xf32>
    %11 = arith.mulf %4, %10 : vector<1x8x1xf32>
    %cst_6 = arith.constant 0.001953125 : f32
    %12 = vector.broadcast %cst_6 : f32 to vector<1x8x1xf32>
    %13 = arith.mulf %9, %12 : vector<1x8x1xf32>
    %14 = arith.mulf %11, %11 : vector<1x8x1xf32>
    %15 = arith.subf %13, %14 : vector<1x8x1xf32>
    %cst_7 = arith.constant 0.000000e+00 : f32
    %16 = vector.broadcast %cst_7 : f32 to vector<1x8x1xf32>
    %17 = arith.maximumf %15, %16 : vector<1x8x1xf32>
    %cst_8 = arith.constant 9.99999974E-6 : f32
    %18 = vector.broadcast %cst_8 : f32 to vector<1x8x1xf32>
    %19 = arith.addf %17, %18 : vector<1x8x1xf32>
    %20 = math.rsqrt %19 : vector<1x8x1xf32>
    %c0_9 = arith.constant 0 : index
    %c0_10 = arith.constant 0 : index
    %c0_11 = arith.constant 0 : index
    %c0_12 = arith.constant 0 : index
    %21 = vector.load %arg2[%c0_9, %c0_10, %c0_11, %c0_12] : memref<2x2x8x1xf32, #tpu.memory_space<vmem>>, vector<2x2x8x1xf32>
    %22 = vector.extract_strided_slice %21 {offsets = [0, 0, 0, 0], sizes = [2, 1, 8, 1], strides = [1, 1, 1, 1]} : vector<2x2x8x1xf32> to vector<2x1x8x1xf32>
    %23 = vector.shape_cast %22 : vector<2x1x8x1xf32> to vector<2x8x1xf32>
    %24 = vector.extract_strided_slice %21 {offsets = [0, 1, 0, 0], sizes = [2, 1, 8, 1], strides = [1, 1, 1, 1]} : vector<2x2x8x1xf32> to vector<2x1x8x1xf32>
    %25 = vector.shape_cast %24 : vector<2x1x8x1xf32> to vector<2x8x1xf32>
    %26 = vector.broadcast %20 : vector<1x8x1xf32> to vector<2x8x1xf32>
    %27 = arith.mulf %23, %26 : vector<2x8x1xf32>
    %28 = vector.broadcast %11 : vector<1x8x1xf32> to vector<2x8x1xf32>
    %29 = arith.mulf %27, %28 : vector<2x8x1xf32>
    %30 = arith.subf %25, %29 : vector<2x8x1xf32>
    %31 = vector.broadcast %27 : vector<2x8x1xf32> to vector<2x8x256xf32>
    %32 = arith.mulf %31, %0 : vector<2x8x256xf32>
    %33 = vector.broadcast %30 : vector<2x8x1xf32> to vector<2x8x256xf32>
    %34 = arith.addf %32, %33 : vector<2x8x256xf32>
    %c0_13 = arith.constant 0 : index
    %c0_14 = arith.constant 0 : index
    %c0_15 = arith.constant 0 : index
    %35 = vector.load %arg3[%c0_13, %c0_14, %c0_15] : memref<2x8x256xf32, #tpu.memory_space<vmem>>, vector<2x8x256xf32>
    tpu.vector_store %arg3[%c0_13, %c0_14, %c0_15], %34 {strides = array<i32>} : memref<2x8x256xf32, #tpu.memory_space<vmem>>, vector<2x8x256xf32>,
    return
  }
  func.func @transform_0(%arg0: i32) -> (i32, i32, i32) {
    %c0_i32 = arith.constant 0 : i32
    %c0_i32_0 = arith.constant 0 : i32
    %c0_i32_1 = arith.constant 0 : i32
    return %c0_i32, %arg0, %c0_i32_0 : i32, i32, i32
  }
  func.func @transform_1(%arg0: i32) -> (i32, i32, i32, i32) {
    %c0_i32 = arith.constant 0 : i32
    %c0_i32_0 = arith.constant 0 : i32
    %c0_i32_1 = arith.constant 0 : i32
    %c0_i32_2 = arith.constant 0 : i32
    return %c0_i32, %c0_i32_0, %arg0, %c0_i32_1 : i32, i32, i32, i32
  }
  func.func @transform_2(%arg0: i32) -> (i32, i32, i32) {
    %c0_i32 = arith.constant 0 : i32
    %c0_i32_0 = arith.constant 0 : i32
    %c0_i32_1 = arith.constant 0 : i32
    return %c0_i32, %arg0, %c0_i32_0 : i32, i32, i32
  }
}

</mosaic_0001>

<llo_original>
// kernel: tpu_custom_call.1
$region0: #{tpu_custom_call.1}
  #allocation0 [shape = 'u32[]', space=smem, size = 0x4, offset = 0x4, fixed_abs, tag = 'smem constant byte address 0x4 - core index']
  #allocation1 [shape = 'u32[144,128]{1,0:T(1,128)}', space=vmem, size = 0x12000, scoped, tag = 'internal scratch']
  %s0 = inlined_call_operand.vmem [shape: f32[2,8,256], index: 0, kind: input, shape index: {}]
  %s1 = inlined_call_operand.vmem [shape: f32[2,2,8,1], index: 1, kind: input, shape index: {}]
  %s2 = inlined_call_operand.hbm [shape: f32[2,8,256], index: 2, kind: output, shape index: {}]
  %s3 = sld [smem:[#allocation0]]
  $region18: #{tpu_custom_call.1} parent=0
    _
  %s5 = ssub.s32 1, %s3
  %s6 = scalar_select 0, %s5, %s3
  $region1: #{tpu_custom_call.1} parent=0
    #allocation2 [shape = 'u8[16384]{0}', space=vmem, size = 0x4000, scoped, tag = 'output window, operand 0, single buffered']
    #allocation3 [shape = 's32[1]{0}', space=sflag, size = 0x4, scoped, tag = 'scoped memory for tpu_custom_call.1']
    %7 = vsyncpa [#allocation3], 0
    // Predicated region
    $region2: #{tpu_custom_call.1} parent=1 // pred_check
      _
    $region3: #{tpu_custom_call.1} parent=1 // pred_check_branch
      %9 = sbr.rel (0) target = $region5
    $region4: #{tpu_custom_call.1} parent=1 // pred_region
      _
    $region5: #{tpu_custom_call.1} parent=1 // pred_fallthru
      _
    // Predicated region
    $region6: #{tpu_custom_call.1} parent=1 // pred_check
      _
    $region7: #{tpu_custom_call.1} parent=1 // pred_check_branch
      %11 = sbr.rel (0) target = $region9
    $region8: #{tpu_custom_call.1} parent=1 // pred_region
      _
    $region9: #{tpu_custom_call.1} parent=1 // pred_fallthru
      _
    %v12 = vld [vmem:[%s0] sm:$0xff]
    %v13 = vld [vmem:[%s0 + $0x8] sm:$0xff]
    %v14 = vld [vmem:[%s0 + $0x10] sm:$0xff]
    %v15 = vld [vmem:[%s0 + $0x18] sm:$0xff]
    %v16 = vadd.f32 %v12, %v13
    %17 = vadd.xlane.f32.xlu0 %v16
    %v18 = vpop.xlane.xlu0 %17
    %v19 = vadd.f32 %v14, %v15
    %20 = vadd.xlane.f32.xlu0 %v19
    %v21 = vpop.xlane.xlu0 %20
    %v22 = vadd.f32 %v18, %v21
    %v23 = vmul.f32 %v12, %v12
    %v24 = vmul.f32 %v13, %v13
    %v25 = vmul.f32 %v14, %v14
    %v26 = vmul.f32 %v15, %v15
    %v27 = vadd.f32 %v23, %v24
    %28 = vadd.xlane.f32.xlu0 %v27
    %v29 = vpop.xlane.xlu0 %28
    %v30 = vadd.f32 %v25, %v26
    %31 = vadd.xlane.f32.xlu0 %v30
    %v32 = vpop.xlane.xlu0 %31
    %v33 = vadd.f32 %v29, %v32
    %v34 = vmul.f32 %v22, 0.001953125
    %v35 = vmul.f32 %v33, 0.001953125
    %v36 = vmul.f32 %v34, %v34
    %v37 = vsub.f32 %v35, %v36
    %v38 = vmax.f32 %v37, 0.0
    %v39 = vadd.f32 %v38, 1e-05
    %v40 = vrsqrt.pop %v39
    %v41 = vld [vmem:[%s1] sm:$0xff]
    %v42 = vld [vmem:[%s1 + $0x8] sm:$0xff]
    %v43 = vld [vmem:[%s1 + $0x10] sm:$0xff]
    %v44 = vld [vmem:[%s1 + $0x18] sm:$0xff]
    %v45 = vmul.f32 %v41, %v40
    %v46 = vmul.f32 %v43, %v40
    %v47 = vmul.f32 %v45, %v34
    %v48 = vmul.f32 %v46, %v34
    %v49 = vsub.f32 %v42, %v47
    %v50 = vsub.f32 %v44, %v48
    %52 = vset.pattern.permute.xlu0 0
    %53 = vperm.xlu0 %52, %v45
    %v54 = vpop.permute.xlu0 %53
    %57 = vset.pattern.permute.xlu0 0
    %58 = vperm.xlu0 %57, %v46
    %v59 = vpop.permute.xlu0 %58
    %v61 = vmul.f32 %v54, %v12
    %v62 = vmul.f32 %v54, %v13
    %v63 = vmul.f32 %v59, %v14
    %v64 = vmul.f32 %v59, %v15
    %66 = vset.pattern.permute.xlu0 0
    %67 = vperm.xlu0 %66, %v49
    %v68 = vpop.permute.xlu0 %67
    %71 = vset.pattern.permute.xlu0 0
    %72 = vperm.xlu0 %71, %v50
    %v73 = vpop.permute.xlu0 %72
    %v75 = vadd.f32 %v61, %v68
    %v76 = vadd.f32 %v62, %v68
    %v77 = vadd.f32 %v63, %v73
    %v78 = vadd.f32 %v64, %v73
    %79 = vst [vmem:[#allocation2] sm:$0xff] %v75
    %80 = vst [vmem:[#allocation2 + $0x8] sm:$0xff] %v76
    %81 = vst [vmem:[#allocation2 + $0x10] sm:$0xff] %v77
    %82 = vst [vmem:[#allocation2 + $0x18] sm:$0xff] %v78
    // Predicated region
    $region10: #{tpu_custom_call.1} parent=1 // pred_check
      _
    $region11: #{tpu_custom_call.1} parent=1 // pred_check_branch
      %84 = sbr.rel (0) target = $region13
    $region12: #{tpu_custom_call.1} parent=1 // pred_region
      %s86 = ssub.s32 512, 512
      %87 = vsyncadd [#allocation3], %s86
      %s88 = sshll.u32 [#allocation2], 4
      %s89 = int_to_ptr.vmem [resolvable:$true] %s88
      %94 = dma.vmem_to_hbm [thread:$0]  %s89, 512, %s2, [#allocation3], 256, 256, 16
    $region13: #{tpu_custom_call.1} parent=1 // pred_fallthru
      _
    // Predicated region
    $region14: #{tpu_custom_call.1} parent=1 // pred_check
      _
    $region15: #{tpu_custom_call.1} parent=1 // pred_check_branch
      %96 = sbr.rel (0) target = $region17
    $region16: #{tpu_custom_call.1} parent=1 // pred_region
      %97 = dma.done [#allocation3], 512
    $region17: #{tpu_custom_call.1} parent=1 // pred_fallthru
      _
    %98 = vsyncpa [#allocation3], 1

</llo_original>
